<compile_context>
chip_gen: v7x
topology: tpu7x:2x2x1
jax: 0.10.0
libtpu: 0.0.40
codegen_flags: <defaults>
</compile_context>

<pallas_src>
import math

import jax
import jax.numpy as jnp
from jax.experimental import pallas as pl
from jax.experimental.pallas import tpu as pltpu


_LANE = 128
_SUBLANE = 8
# Per-buffer block budget: 2 streams (x-in, out) x 2 pipeline buffers
# -> ~4x this figure of VMEM (~8 MiB), safe on every generation.
_TARGET_BLOCK_BYTES = 2 * 1024 * 1024
# Below this much data, skip pallas_call entirely (launch + DMA dominate).
_MIN_PALLAS_BYTES = 64 * 1024
# Threshold below which one grid step (single TC) is fine even on v7x.
_SINGLE_BLOCK_BYTES = 256 * 1024


def _scale_kernel(scale_ref, x_ref, out_ref):
    # scale_ref: (1, W) lane-dense, phase-aligned replication of the diagonal;
    #            constant block index -> DMA'd once, reused across grid steps.
    # x_ref/out_ref: (TB, W) lane-dense slab of the flattened rows.
    out_ref[...] = (x_ref[...] * scale_ref[...]).astype(out_ref.dtype)


def _pallas_scale_lane_dense(scale_row: jax.Array, x2d: jax.Array, out_dtype) -> jax.Array:
    """Elementwise out = x2d * scale_row (broadcast over rows).  x2d: (R, W)."""
    R, W = x2d.shape
    itemsize = jnp.dtype(x2d.dtype).itemsize
    row_bytes = W * itemsize

    # Biggest cap on rows-per-block that keeps a block <= ~2 MiB, sublane-aligned.
    tb_cap = max(_SUBLANE, (_TARGET_BLOCK_BYTES // row_bytes) // _SUBLANE * _SUBLANE)

    if R * row_bytes <= _SINGLE_BLOCK_BYTES or R < 2 * _SUBLANE:
        # Tiny: one full-extent block (full-dim block shapes are always legal).
        tb = R
    else:
        # >= 2 grid steps so the "parallel" axis shards across v7x's 2 TCs,
        # block bytes capped so double-buffered streams fit scoped VMEM.
        half = (-(-R // 2)) // _SUBLANE * _SUBLANE  # ceil(R/2) rounded to sublane
        tb = min(tb_cap, max(_SUBLANE, half))
    grid = (pl.cdiv(R, tb),)

    return pl.pallas_call(
        _scale_kernel,
        out_shape=jax.ShapeDtypeStruct((R, W), out_dtype),
        grid=grid,
        in_specs=[
            pl.BlockSpec((1, W), lambda i: (0, 0)),   # scale: constant block -> fetched once
            pl.BlockSpec((tb, W), lambda i: (i, 0)),  # x: tiled over folded rows
        ],
        out_specs=pl.BlockSpec((tb, W), lambda i: (i, 0)),
        compiler_params=pltpu.CompilerParams(
            dimension_semantics=("parallel",),        # shard row tiles across TCs (v7x)
        ),
    )(scale_row, x2d)


def scale_rows(scale_vec: jax.Array, x: jax.Array, *, out_dtype=None,
               force_pallas: bool = False) -> jax.Array:
    """Equivalent of bmv(diag(scale_vec)[None], x): out[b, i] = x[b, i] * scale_vec[i].

    scale_vec: (D,) or (1, D);  x: (B, D);  returns (B, D) in `out_dtype`
    (default x.dtype; pass jnp.bfloat16 to halve store traffic, e.g. on v5e).
    """
    B, D = x.shape
    scale_vec = scale_vec.reshape(-1).astype(x.dtype)
    assert scale_vec.shape == (D,)
    out_dtype = out_dtype or x.dtype
    itemsize = jnp.dtype(x.dtype).itemsize

    if (B * D * itemsize < _MIN_PALLAS_BYTES) and not force_pallas:
        # Policy-sized batches (B~8, O=32/A=16): let XLA fuse the multiply into
        # the surrounding network instead of paying a kernel launch + DMA.
        return (x * scale_vec[None, :]).astype(out_dtype)

    # ---- choose a lane-dense fold width W (multiple of 128 and of D) ----
    g = math.gcd(D, _LANE)
    fold_period = (D // g) * _LANE            # lcm(D, 128)
    if fold_period <= 4096:
        W = fold_period
        while W < 512:                        # widen to >= 512 lanes (still mult. of D)
            W *= 2
    else:
        # TODO(synk): awkward D (lcm with 128 too large) — fall back to the
        # row-layout kernel (last block dim == full D is still legal).
        W = D

    n = B * D
    R = -(-n // W)                            # rows after folding (ceil)
    pad = R * W - n

    flat = x.reshape(-1)
    if pad:
        flat = jnp.pad(flat, (0, pad))        # zero tail; zeros * scale discarded below
    x2d = flat.reshape(R, W)
    scale_row = jnp.tile(scale_vec, W // D)[None, :]   # phase-aligned: D | W

    y2d = _pallas_scale_lane_dense(scale_row, x2d, out_dtype)
    return y2d.reshape(-1)[:n].reshape(B, D)


class BasePolicy:
    """JAX/Pallas port of ocs2_mpcnet_core.policy.base.BasePolicy.

    Attributes:
        observation_scaling: (1, O, O) diagonal scaling matrix (API parity).
        action_scaling:      (1, A, A) diagonal scaling matrix (API parity).
    """

    def __init__(self, observation_scaling_vec: jax.Array, action_scaling_vec: jax.Array,
                 dtype=jnp.float32):
        obs_vec = observation_scaling_vec.astype(dtype)
        act_vec = action_scaling_vec.astype(dtype)
        # torch: tensor(vec).diag().unsqueeze(0) -> (1, D, D); kept for attribute
        # parity with the PyTorch module — the kernels use the vectors directly.
        self.observation_scaling = jnp.diag(obs_vec)[None, :, :]
        self.action_scaling = jnp.diag(act_vec)[None, :, :]
        self._obs_scale_vec = obs_vec
        self._act_scale_vec = act_vec

    # TODO(synk): forward() is an abstractmethod on BasePolicy; concrete
    # subclasses define it (and should fold the diagonal scalings into their
    # first/last linear layers for zero runtime cost).

    def scale_observation(self, observation: jax.Array) -> jax.Array:
        """(B, O) -> (B, O), scaled by the fixed diagonal observation matrix."""
        return scale_rows(self._obs_scale_vec, observation)

    def scale_action(self, action: jax.Array) -> jax.Array:
        """(B, A) -> (B, A), scaled by the fixed diagonal action matrix."""
        return scale_rows(self._act_scale_vec, action)


if __name__ == "__main__":
    key = jax.random.PRNGKey(0)
    k_obs_scale, k_act_scale, k_obs, k_act = jax.random.split(key, 4)

    B = 8     # batch
    O = 32    # observation dim
    A = 16    # action dim

    # Deterministic stand-ins for config.OBSERVATION_SCALING / ACTION_SCALING.
    obs_scaling_vec = jax.random.uniform(k_obs_scale, (O,), jnp.float32, 0.5, 2.0)
    act_scaling_vec = jax.random.uniform(k_act_scale, (A,), jnp.float32, 0.5, 2.0)

    policy = BasePolicy(obs_scaling_vec, act_scaling_vec)

    observation = jax.random.normal(k_obs, (B, O), jnp.float32)
    action = jax.random.normal(k_act, (B, A), jnp.float32)

    # Module API (tiny batch -> fused plain-JAX fast path).
    scaled_obs = policy.scale_observation(observation)
    scaled_act = policy.scale_action(action)
    jax.block_until_ready(scaled_obs)
    jax.block_until_ready(scaled_act)

    # Reference: plain-JAX bmv with the (1, D, D) diagonal matrices.
    ref_obs = jnp.einsum("ij,bj->bi", policy.observation_scaling[0], observation)
    ref_act = jnp.einsum("ij,bj->bi", policy.action_scaling[0], action)
    assert jnp.allclose(scaled_obs, ref_obs, atol=1e-5, rtol=1e-5)
    assert jnp.allclose(scaled_act, ref_act, atol=1e-5, rtol=1e-5)

    # Run the Pallas kernel at the module's shapes (forced past the fast path).
    scaled_obs_k = scale_rows(policy._obs_scale_vec, observation, force_pallas=True)
    scaled_act_k = scale_rows(policy._act_scale_vec, action, force_pallas=True)
    jax.block_until_ready(scaled_obs_k)
    jax.block_until_ready(scaled_act_k)
    assert jnp.allclose(scaled_obs_k, ref_obs, atol=1e-5, rtol=1e-5)
    assert jnp.allclose(scaled_act_k, ref_act, atol=1e-5, rtol=1e-5)

    # Larger ragged batch: exercises lane folding, tail padding, multi-step
    # grid (>= 2 "parallel" steps) and the ragged last block.
    B2 = 4096 + 3
    x2 = jax.random.normal(jax.random.PRNGKey(1), (B2, O), jnp.float32)
    y2 = scale_rows(policy._obs_scale_vec, x2)
    jax.block_until_ready(y2)
    assert jnp.allclose(y2, x2 * policy._obs_scale_vec[None, :], atol=1e-5, rtol=1e-5)

    print("KERNEL_OK")
</pallas_src>

<mosaic_0001>
module attributes {stable_mosaic.version = 11 : i64} {
  func.func @_scale_kernel(%arg0: i32, %arg1: memref<1x512xf32, #tpu.memory_space<vmem>>, %arg2: memref<1x512xf32, #tpu.memory_space<vmem>>, %arg3: memref<1x512xf32, #tpu.memory_space<vmem>>) attributes {dimension_semantics = [#tpu.dimension_semantics<parallel>], iteration_bounds = array<i64: 1>, scalar_prefetch = 0 : i64, scratch_operands = 0 : i64, tpu.core_type = #tpu.core_type<tc>, window_params = [{pipeline_mode = #tpu.pipeline_mode<synchronous>, transform_indices = @transform_0, window_bounds = array<i64: 1, 512>}, {transform_indices = @transform_1, window_bounds = array<i64: 1, 512>}, {transform_indices = @transform_2, window_bounds = array<i64: 1, 512>}]} {
    %c0 = arith.constant 0 : index
    %c0_0 = arith.constant 0 : index
    %0 = vector.load %arg2[%c0, %c0_0] : memref<1x512xf32, #tpu.memory_space<vmem>>, vector<1x512xf32>
    %c0_1 = arith.constant 0 : index
    %c0_2 = arith.constant 0 : index
    %1 = vector.load %arg1[%c0_1, %c0_2] : memref<1x512xf32, #tpu.memory_space<vmem>>, vector<1x512xf32>
    %2 = arith.mulf %0, %1 : vector<1x512xf32>
    %c0_3 = arith.constant 0 : index
    %c0_4 = arith.constant 0 : index
    %3 = vector.load %arg3[%c0_3, %c0_4] : memref<1x512xf32, #tpu.memory_space<vmem>>, vector<1x512xf32>
    tpu.vector_store %arg3[%c0_3, %c0_4], %2 {strides = array<i32>} : memref<1x512xf32, #tpu.memory_space<vmem>>, vector<1x512xf32>,
    return
  }
  func.func @transform_0(%arg0: i32) -> (i32, i32) {
    %c0_i32 = arith.constant 0 : i32
    %c0_i32_0 = arith.constant 0 : i32
    %c0_i32_1 = arith.constant 0 : i32
    return %c0_i32, %c0_i32_0 : i32, i32
  }
  func.func @transform_1(%arg0: i32) -> (i32, i32) {
    %c0_i32 = arith.constant 0 : i32
    %c0_i32_0 = arith.constant 0 : i32
    return %arg0, %c0_i32 : i32, i32
  }
  func.func @transform_2(%arg0: i32) -> (i32, i32) {
    %c0_i32 = arith.constant 0 : i32
    %c0_i32_0 = arith.constant 0 : i32
    return %arg0, %c0_i32 : i32, i32
  }
}

</mosaic_0001>

<llo_original>
// kernel: tpu_custom_call.1
$region0: #{tpu_custom_call.1}
  #allocation0 [shape = 'u32[]', space=smem, size = 0x4, offset = 0x4, fixed_abs, tag = 'smem constant byte address 0x4 - core index']
  #allocation1 [shape = 'u32[144,128]{1,0:T(1,128)}', space=vmem, size = 0x12000, scoped, tag = 'internal scratch']
  %s0 = inlined_call_operand.hbm [shape: f32[1,512], index: 0, kind: input, shape index: {}]
  %s1 = inlined_call_operand.hbm [shape: f32[1,512], index: 1, kind: input, shape index: {}]
  %s2 = inlined_call_operand.hbm [shape: f32[1,512], index: 2, kind: output, shape index: {}]
  %s3 = sld [smem:[#allocation0]]
  $region26: #{tpu_custom_call.1} parent=0
    _
  %s5 = ssub.s32 1, %s3
  %s6 = scalar_select 0, %s5, %s3
  $region1: #{tpu_custom_call.1} parent=0
    #allocation2 [shape = 'u8[2048]{0}', space=vmem, size = 0x800, scoped, tag = 'input window, operand 0, single buffered']
    #allocation3 [shape = 's32[1]{0}', space=sflag, size = 0x4, scoped, tag = 'scoped memory for tpu_custom_call.1']
    #allocation4 [shape = 's32[1]{0}', space=sflag, size = 0x4, scoped, tag = 'scoped memory for tpu_custom_call.1']
    #allocation5 [shape = 'u8[2048]{0}', space=vmem, size = 0x800, scoped, tag = 'input window, operand 1, single buffered']
    #allocation6 [shape = 's32[1]{0}', space=sflag, size = 0x4, scoped, tag = 'scoped memory for tpu_custom_call.1']
    #allocation7 [shape = 'u8[2048]{0}', space=vmem, size = 0x800, scoped, tag = 'output window, operand 0, single buffered']
    %7 = vsyncpa [#allocation3], 0
    %8 = vsyncpa [#allocation6], 0
    %9 = vsyncpa [#allocation4], 0
    // Predicated region
    $region2: #{tpu_custom_call.1} parent=1 // pred_check
      _
    $region3: #{tpu_custom_call.1} parent=1 // pred_check_branch
      %11 = sbr.rel (0) target = $region5
    $region4: #{tpu_custom_call.1} parent=1 // pred_region
      %s13 = ssub.s32 64, 64
      %14 = vsyncadd [#allocation3], %s13
      %s16 = sshll.u32 [#allocation2], 4
      %s17 = int_to_ptr.vmem [resolvable:$true] %s16
      %19 = dma.hbm_to_vmem [thread:$0]  %s0, 64, %s17, [#allocation3]
    $region5: #{tpu_custom_call.1} parent=1 // pred_fallthru
      _
    // Predicated region
    $region6: #{tpu_custom_call.1} parent=1 // pred_check
      _
    $region7: #{tpu_custom_call.1} parent=1 // pred_check_branch
      %21 = sbr.rel (0) target = $region9
    $region8: #{tpu_custom_call.1} parent=1 // pred_region
      %s23 = ssub.s32 64, 64
      %24 = vsyncadd [#allocation6], %s23
      %s26 = sshll.u32 [#allocation5], 4
      %s27 = int_to_ptr.vmem [resolvable:$true] %s26
      %29 = dma.hbm_to_vmem [thread:$0]  %s1, 64, %s27, [#allocation6]
    $region9: #{tpu_custom_call.1} parent=1 // pred_fallthru
      _
    // Predicated region
    $region10: #{tpu_custom_call.1} parent=1 // pred_check
      _
    $region11: #{tpu_custom_call.1} parent=1 // pred_check_branch
      %31 = sbr.rel (0) target = $region13
    $region12: #{tpu_custom_call.1} parent=1 // pred_region
      %32 = dma.done [#allocation3], 64
    $region13: #{tpu_custom_call.1} parent=1 // pred_fallthru
      _
    // Predicated region
    $region14: #{tpu_custom_call.1} parent=1 // pred_check
      _
    $region15: #{tpu_custom_call.1} parent=1 // pred_check_branch
      %34 = sbr.rel (0) target = $region17
    $region16: #{tpu_custom_call.1} parent=1 // pred_region
      %35 = dma.done [#allocation6], 64
    $region17: #{tpu_custom_call.1} parent=1 // pred_fallthru
      _
    %v36 = vld [vmem:[#allocation5] sm:$0xf]
    %v37 = vld [vmem:[#allocation2] sm:$0xf]
    %v38 = vmul.f32 %v36, %v37
    %v39 = vlaneseq
    %vm40 = vcmp.ge.s32.totalorder %v39, 0
    %vm41 = vcmp.lt.s32.totalorder %v39, 512
    %vm42 = vmand %vm40, %vm41
    %43 = vst.msk [vmem:[#allocation7] sm:$0xf] %vm42, %v38
    // Predicated region
    $region18: #{tpu_custom_call.1} parent=1 // pred_check
      _
    $region19: #{tpu_custom_call.1} parent=1 // pred_check_branch
      %45 = sbr.rel (0) target = $region21
    $region20: #{tpu_custom_call.1} parent=1 // pred_region
      %s47 = ssub.s32 64, 64
      %48 = vsyncadd [#allocation4], %s47
      %s50 = sshll.u32 [#allocation7], 4
      %s51 = int_to_ptr.vmem [resolvable:$true] %s50
      %53 = dma.vmem_to_hbm [thread:$0]  %s51, 64, %s2, [#allocation4]
    $region21: #{tpu_custom_call.1} parent=1 // pred_fallthru
      _
    // Predicated region
    $region22: #{tpu_custom_call.1} parent=1 // pred_check
      _
    $region23: #{tpu_custom_call.1} parent=1 // pred_check_branch
      %55 = sbr.rel (0) target = $region25
    $region24: #{tpu_custom_call.1} parent=1 // pred_region
      %56 = dma.done [#allocation4], 64
    $region25: #{tpu_custom_call.1} parent=1 // pred_fallthru
      _
    %57 = vsyncpa [#allocation3], 1
    %58 = vsyncpa [#allocation6], 1
    %59 = vsyncpa [#allocation4], 1

</llo_original>
